<compile_context>
chip_gen: v5e
topology: v5e:2x2
jax: 0.10.0
libtpu: 0.0.40
codegen_flags: <defaults>
</compile_context>

<pallas_src>
import functools

import jax
import jax.numpy as jnp
from jax import lax
from jax.experimental import pallas as pl
from jax.experimental.pallas import tpu as pltpu


_GUARD = 4  # zero guard rows on each side of every activation's time axis (even)


# ---------------------------------------------------------------------------
# Fused per-layer Pallas kernel (time-tiled, guard-banded activations)
# ---------------------------------------------------------------------------

def _layer_kernel(x_ref, wd_ref, bd_ref, w1_ref, b1_ref, w2_ref, b2_ref, o_ref,
                  *, t_out, tile, num_tiles):
    """One encoder layer for one batch element.

    x_ref  : (1, t_out + 4, 2*cin)  pair rows [x[2t] | x[2t+1]], 2 zero guard
                                    pair-rows on each side (compute dtype)
    wd_ref : (4*cin, cout)          down-conv weight, row block k == tap k
    w1_ref : (3*cout, cout)         ResBlock k=3 conv weight
    w2_ref : (cout, cout)           ResBlock 1x1 conv weight
    b*_ref : (1, cout) f32          biases (padded lanes must stay zero)
    o_ref  : (1, 4 + t_out + 4, cout)  output with zero guard bands (compute dtype)
    """
    f32 = jnp.float32
    cdt = wd_ref.dtype                 # MXU input dtype (bf16 by default, or f32)
    cin = x_ref.shape[2] // 2
    cout = o_ref.shape[2]
    g = _GUARD

    bd = bd_ref[...]                   # (1, cout) f32, hoisted out of the loop
    b1 = b1_ref[...]
    b2 = b2_ref[...]

    # Zero the output guard band: it is the next layer's conv zero padding.
    zg = jnp.zeros((g, cout), o_ref.dtype)
    o_ref[0, 0:g, :] = zg
    o_ref[0, g + t_out:g + t_out + g, :] = zg

    def body(j, carry):
        # Ragged last tile handled by clamping (overlap-recompute; writes idempotent).
        t0 = jnp.minimum(j * tile, t_out - tile)

        # Pair-row window covering extended h rows [t0-1, t0+tile+1).
        xw = x_ref[0, pl.ds(t0, tile + 4), :]                    # (tile+4, 2*cin)

        # ---- Conv1d(cin, cout, k=4, s=2, p=1): one K=4*cin im2col matmul ----
        # h[t] = W0 x[2t-1] + W1 x[2t] + W2 x[2t+1] + W3 x[2t+2] + b
        xk = jnp.concatenate(
            [xw[0:tile + 2, cin:],      # x[2t-1]  (high half of pair row t-1)
             xw[1:tile + 3, :],         # x[2t], x[2t+1]
             xw[2:tile + 4, :cin]],     # x[2t+2]  (low half of pair row t+1)
            axis=-1)                    # (tile+2, 4*cin), compute dtype
        acc = jnp.dot(xk, wd_ref[...], preferred_element_type=f32) + bd
        h = jnp.where(acc >= 0.0, acc, 0.2 * acc)                # LeakyReLU(0.2), f32

        # Halo rows outside [0, t_out) are phantom: force them to the ResBlock's
        # conv zero padding (h[-1] = h[t_out] = 0).
        ge = lax.broadcasted_iota(jnp.int32, (tile + 2, 1), 0) + (t0 - 1)
        h = jnp.where(jnp.logical_and(ge >= 0, ge < t_out), h, 0.0)

        # ---- ResBlock: Conv1d(c,c,3,1,1) -> ReLU -> Conv1d(c,c,1) + residual ----
        hc = h.astype(cdt)
        hk = jnp.concatenate([hc[0:tile, :], hc[1:tile + 1, :], hc[2:tile + 2, :]],
                             axis=-1)                            # (tile, 3*cout)
        r = jnp.maximum(jnp.dot(hk, w1_ref[...], preferred_element_type=f32) + b1,
                        0.0)
        r = jnp.dot(r.astype(cdt), w2_ref[...], preferred_element_type=f32) + b2
        out = h[1:tile + 1, :] + r                               # residual add, f32

        o_ref[0, pl.ds(g + t0, tile), :] = out.astype(o_ref.dtype)
        return carry

    lax.fori_loop(0, num_tiles, body, 0)


def _layer_call(xg, layer, tile_rows):
    """xg: (N, 4 + T_in + 4, cin_lane) guard-banded activation (compute dtype)."""
    n, t_g, cin_lane = xg.shape
    t_in = t_g - 2 * _GUARD
    if t_in % 2 != 0:
        raise ValueError("time length must be even at every downsampling layer")
    t_out = t_in // 2

    wd, w1, w2 = layer["w_down"], layer["w_r1"], layer["w_r2"]
    bd, b1, b2 = layer["b_down"], layer["b_r1"], layer["b_r2"]
    cout_p = wd.shape[1]
    assert wd.shape[0] == 4 * cin_lane, (wd.shape, cin_lane)

    # Free reshape to pair rows [x[2t] | x[2t+1]]; guard band -> 2 zero pair rows.
    xr = xg.reshape(n, t_g // 2, 2 * cin_lane)
    tile = max(1, min(tile_rows, t_out))
    num_tiles = -(-t_out // tile)

    cdt = wd.dtype
    it = jnp.dtype(cdt).itemsize
    t_out_g = t_out + 2 * _GUARD

    # Useful (unpadded) work only, so the scheduler isn't misled by lane padding.
    cin, cout = layer["cin"], layer["cout"]
    flops = 2 * n * t_out * cout * (4 * cin + 3 * cout + cout)
    bytes_accessed = ((xr.size + n * t_out_g * cout_p) * it
                      + (wd.size + w1.size + w2.size) * it
                      + (bd.size + b1.size + b2.size) * 4)

    # Explicit VMEM budget: double-buffered blocks + generous bound on bounded
    # per-tile temporaries; only raise the limit above the default scoped budget
    # when actually needed.  (Weights have constant index_maps so they are only
    # DMA'd once; their double-buffer allocation is small and left alone.)
    blk = ((t_g // 2) * 2 * cin_lane * it * 2
           + t_out_g * cout_p * it * 2
           + (4 * cin_lane + 4 * cout_p) * cout_p * it * 2
           + 3 * cout_p * 4 * 2)
    tmp = ((tile + 4) * 6 * cin_lane * it
           + (tile + 2) * cout_p * (3 * it + 12)
           + tile * cout_p * (3 * it + 12))
    need = blk + 4 * tmp + (4 << 20)
    vmem_limit = int(min(need, 64 << 20)) if need > (16 << 20) else None

    kernel = functools.partial(_layer_kernel, t_out=t_out, tile=tile,
                               num_tiles=num_tiles)
    return pl.pallas_call(
        kernel,
        out_shape=jax.ShapeDtypeStruct((n, t_out_g, cout_p), cdt),
        grid=(n,),
        in_specs=[
            pl.BlockSpec((1, t_g // 2, 2 * cin_lane), lambda i: (i, 0, 0)),
            pl.BlockSpec((4 * cin_lane, cout_p), lambda i: (0, 0)),   # resident
            pl.BlockSpec((1, cout_p), lambda i: (0, 0)),
            pl.BlockSpec((3 * cout_p, cout_p), lambda i: (0, 0)),     # resident
            pl.BlockSpec((1, cout_p), lambda i: (0, 0)),
            pl.BlockSpec((cout_p, cout_p), lambda i: (0, 0)),         # resident
            pl.BlockSpec((1, cout_p), lambda i: (0, 0)),
        ],
        out_specs=pl.BlockSpec((1, t_out_g, cout_p), lambda i: (i, 0, 0)),
        compiler_params=pltpu.CompilerParams(
            dimension_semantics=("parallel",),
            vmem_limit_bytes=vmem_limit),
        cost_estimate=pl.CostEstimate(flops=flops, transcendentals=0,
                                      bytes_accessed=bytes_accessed),
    )(xr, wd, bd, w1, b1, w2, b2)


# ---------------------------------------------------------------------------
# Parameter init (matmul-ready, lane-padded, compute-dtype weights precomputed once)
# ---------------------------------------------------------------------------

def _round_up(x, m):
    return (x + m - 1) // m * m


def _xavier_normal(key, c_out, c_in, k):
    fan_in, fan_out = c_in * k, c_out * k
    std = (2.0 / (fan_in + fan_out)) ** 0.5
    return std * jax.random.normal(key, (c_out, c_in, k), dtype=jnp.float32)


def _to_mat_padded(w, cin_p, cout_p):
    """Torch Conv1d weight (C_out, C_in, K) -> lane-padded matmul weight
    (K*cin_p, cout_p); row block k is the (cin_p, cout_p) matrix for tap k."""
    c_out, c_in, k = w.shape
    wp = jnp.pad(w, ((0, cout_p - c_out), (0, cin_p - c_in), (0, 0)))
    return jnp.transpose(wp, (2, 1, 0)).reshape(k * cin_p, cout_p)


def init_vq_encoder_params(key, input_size, channels, n_down,
                           compute_dtype=jnp.bfloat16):
    assert len(channels) == n_down
    params = []
    c_prev = input_size
    for i in range(n_down):
        c = channels[i]
        key, k1, k2, k3 = jax.random.split(key, 4)
        down_w = _xavier_normal(k1, c, c_prev, 4)   # Conv1d(c_prev, c, 4, 2, 1)
        res_w1 = _xavier_normal(k2, c, c, 3)        # ResBlock Conv1d(c, c, 3, 1, 1)
        res_w2 = _xavier_normal(k3, c, c, 1)        # ResBlock Conv1d(c, c, 1)
        # Layer 0 keeps its channels compact in HBM (no 128-lane pad); deeper
        # layers consume the previous layer's 128-lane-padded output.
        cin_lane = c_prev if i == 0 else _round_up(c_prev, 128)
        cout_p = _round_up(c, 128)
        params.append({
            # Precomputed compute-dtype MXU copies (no per-call casts).
            "w_down": _to_mat_padded(down_w, cin_lane, cout_p).astype(compute_dtype),
            "b_down": jnp.zeros((1, cout_p), jnp.float32),
            "w_r1": _to_mat_padded(res_w1, cout_p, cout_p).astype(compute_dtype),
            "b_r1": jnp.zeros((1, cout_p), jnp.float32),
            "w_r2": _to_mat_padded(res_w2, cout_p, cout_p).astype(compute_dtype),
            "b_r2": jnp.zeros((1, cout_p), jnp.float32),
            "cin": c_prev, "cout": c,
            # NOTE: when loading real checkpoints, keep padded bias lanes zero so
            # padded activation lanes provably stay zero.
            "raw": {"down_w": down_w, "down_b": jnp.zeros((c,), jnp.float32),
                    "res_w1": res_w1, "res_b1": jnp.zeros((c,), jnp.float32),
                    "res_w2": res_w2, "res_b2": jnp.zeros((c,), jnp.float32)},
        })
        c_prev = c
    return params


def vq_encoder_forward(x, params, tile_rows=256):
    """x: (N, T, input_size) f32 -> (N, T // 2**n_down, channels[-1]) f32.

    Activation storage / MXU-input dtype is params' weight dtype (bf16 by
    default, valid on v5e/v6e/v7x); accumulation and epilogues are always f32.
    """
    n, t, _ = x.shape
    n_down = len(params)
    if t % (2 ** n_down) != 0:
        raise ValueError("T must be divisible by 2**n_down")
    cdt = params[0]["w_down"].dtype
    # Layer-0 input stays channel-compact in HBM; only a tiny zero time-guard
    # band is added so every layer's conv zero padding is pre-materialized and
    # the kernels need no halo scratch or boundary branches.
    h = jnp.pad(x.astype(cdt), ((0, 0), (_GUARD, _GUARD), (0, 0)))
    for layer in params:
        h = _layer_call(h, layer, tile_rows)
    t_final = t >> n_down
    return h[:, _GUARD:_GUARD + t_final, :params[-1]["cout"]].astype(jnp.float32)


# ---------------------------------------------------------------------------
# Pure-JAX reference (correctness check only)
# ---------------------------------------------------------------------------

def _conv1d_ref(x, w, b, stride, pad):
    wio = jnp.transpose(w, (2, 1, 0))  # (K, C_in, C_out)
    y = lax.conv_general_dilated(x, wio, (stride,), [(pad, pad)],
                                 dimension_numbers=("NWC", "WIO", "NWC"))
    return y + b.reshape(1, 1, -1)


def vq_encoder_ref(x, params):
    h = x
    for layer in params:
        raw = layer["raw"]
        h = _conv1d_ref(h, raw["down_w"], raw["down_b"], 2, 1)
        h = jnp.where(h >= 0.0, h, 0.2 * h)                      # LeakyReLU(0.2)
        r = jnp.maximum(_conv1d_ref(h, raw["res_w1"], raw["res_b1"], 1, 1), 0.0)
        r = _conv1d_ref(r, raw["res_w2"], raw["res_b2"], 1, 0)
        h = h + r
    return h


if __name__ == "__main__":
    key = jax.random.PRNGKey(0)
    kx, kp = jax.random.split(key)

    N, T, input_size = 2, 16, 8
    channels, n_down = [32, 64], 2

    x = jax.random.normal(kx, (N, T, input_size), dtype=jnp.float32)

    # Same key -> identical raw weights; only the precomputed MXU copies differ.
    params_f32 = init_vq_encoder_params(kp, input_size, channels, n_down,
                                        compute_dtype=jnp.float32)
    params_bf16 = init_vq_encoder_params(kp, input_size, channels, n_down,
                                         compute_dtype=jnp.bfloat16)

    ref = vq_encoder_ref(x, params_f32)

    # f32 path (strict check against the lax.conv reference).
    out = jax.block_until_ready(vq_encoder_forward(x, params_f32))
    assert out.shape == (N, T // 2 ** n_down, channels[-1]), out.shape
    assert jnp.allclose(out, ref, atol=2e-4, rtol=2e-4), \
        float(jnp.max(jnp.abs(out - ref)))

    # bf16 end-to-end storage / MXU inputs (all TPU generations incl. v5e);
    # validated relative to the f32 kernel output, not the reference.
    out_bf = jax.block_until_ready(vq_encoder_forward(x, params_bf16))
    assert out_bf.shape == out.shape
    rel = float(jnp.max(jnp.abs(out_bf - out)) / (jnp.max(jnp.abs(out)) + 1e-6))
    assert rel < 5e-2, rel

    print("KERNEL_OK")
</pallas_src>

<mosaic_0001>
module attributes {stable_mosaic.version = 11 : i64} {
  func.func @_layer_kernel(%arg0: i32, %arg1: memref<1x12x16xf32, #tpu.memory_space<vmem>>, %arg2: memref<32x128xf32, #tpu.memory_space<vmem>>, %arg3: memref<1x128xf32, #tpu.memory_space<vmem>>, %arg4: memref<384x128xf32, #tpu.memory_space<vmem>>, %arg5: memref<1x128xf32, #tpu.memory_space<vmem>>, %arg6: memref<128x128xf32, #tpu.memory_space<vmem>>, %arg7: memref<1x128xf32, #tpu.memory_space<vmem>>, %arg8: memref<1x16x128xf32, #tpu.memory_space<vmem>>) attributes {dimension_semantics = [#tpu.dimension_semantics<parallel>], iteration_bounds = array<i64: 2>, scalar_prefetch = 0 : i64, scratch_operands = 0 : i64, tpu.core_type = #tpu.core_type<tc>, window_params = [{transform_indices = @transform_0, window_bounds = array<i64: 1, 12, 16>}, {pipeline_mode = #tpu.pipeline_mode<synchronous>, transform_indices = @transform_1, window_bounds = array<i64: 32, 128>}, {pipeline_mode = #tpu.pipeline_mode<synchronous>, transform_indices = @transform_2, window_bounds = array<i64: 1, 128>}, {pipeline_mode = #tpu.pipeline_mode<synchronous>, transform_indices = @transform_3, window_bounds = array<i64: 384, 128>}, {pipeline_mode = #tpu.pipeline_mode<synchronous>, transform_indices = @transform_4, window_bounds = array<i64: 1, 128>}, {pipeline_mode = #tpu.pipeline_mode<synchronous>, transform_indices = @transform_5, window_bounds = array<i64: 128, 128>}, {pipeline_mode = #tpu.pipeline_mode<synchronous>, transform_indices = @transform_6, window_bounds = array<i64: 1, 128>}, {transform_indices = @transform_7, window_bounds = array<i64: 1, 16, 128>}]} {
    %c0 = arith.constant 0 : index
    %c0_0 = arith.constant 0 : index
    %0 = vector.load %arg3[%c0, %c0_0] : memref<1x128xf32, #tpu.memory_space<vmem>>, vector<1x128xf32>
    %c0_1 = arith.constant 0 : index
    %c0_2 = arith.constant 0 : index
    %1 = vector.load %arg5[%c0_1, %c0_2] : memref<1x128xf32, #tpu.memory_space<vmem>>, vector<1x128xf32>
    %c0_3 = arith.constant 0 : index
    %c0_4 = arith.constant 0 : index
    %2 = vector.load %arg7[%c0_3, %c0_4] : memref<1x128xf32, #tpu.memory_space<vmem>>, vector<1x128xf32>
    %cst = arith.constant 0.000000e+00 : f32
    %3 = vector.broadcast %cst : f32 to vector<4x128xf32>
    %c0_5 = arith.constant 0 : index
    %c0_6 = arith.constant 0 : index
    %c0_7 = arith.constant 0 : index
    %4 = vector.load %arg8[%c0_5, %c0_6, %c0_7] : memref<1x16x128xf32, #tpu.memory_space<vmem>>, vector<1x4x128xf32>
    %5 = vector.shape_cast %4 : vector<1x4x128xf32> to vector<4x128xf32>
    %6 = vector.shape_cast %3 : vector<4x128xf32> to vector<1x4x128xf32>
    tpu.vector_store %arg8[%c0_5, %c0_6, %c0_7], %6 {strides = array<i32>} : memref<1x16x128xf32, #tpu.memory_space<vmem>>, vector<1x4x128xf32>,
    %c0_8 = arith.constant 0 : index
    %c12 = arith.constant 12 : index
    %c0_9 = arith.constant 0 : index
    %7 = vector.load %arg8[%c0_8, %c12, %c0_9] : memref<1x16x128xf32, #tpu.memory_space<vmem>>, vector<1x4x128xf32>
    %8 = vector.shape_cast %7 : vector<1x4x128xf32> to vector<4x128xf32>
    %9 = vector.shape_cast %3 : vector<4x128xf32> to vector<1x4x128xf32>
    tpu.vector_store %arg8[%c0_8, %c12, %c0_9], %9 {strides = array<i32>} : memref<1x16x128xf32, #tpu.memory_space<vmem>>, vector<1x4x128xf32>,
    %c0_i32 = arith.constant 0 : i32
    %c8_i32 = arith.constant 8 : i32
    %10 = arith.muli %c0_i32, %c8_i32 : i32
    %c0_i32_10 = arith.constant 0 : i32
    %11 = arith.minsi %10, %c0_i32_10 : i32
    %c0_11 = arith.constant 0 : index
    %12 = arith.index_cast %11 : i32 to index
    %c0_12 = arith.constant 0 : index
    %13 = vector.load %arg1[%c0_11, %12, %c0_12] : memref<1x12x16xf32, #tpu.memory_space<vmem>>, vector<1x12x16xf32>
    %14 = vector.shape_cast %13 : vector<1x12x16xf32> to vector<12x16xf32>
    %15 = vector.extract_strided_slice %14 {offsets = [0, 8], sizes = [10, 8], strides = [1, 1]} : vector<12x16xf32> to vector<10x8xf32>
    %16 = vector.extract_strided_slice %14 {offsets = [1, 0], sizes = [10, 16], strides = [1, 1]} : vector<12x16xf32> to vector<10x16xf32>
    %17 = vector.extract_strided_slice %14 {offsets = [2, 0], sizes = [10, 8], strides = [1, 1]} : vector<12x16xf32> to vector<10x8xf32>
    %18 = tpu.concatenate %15, %16, %17 in 1 : vector<10x8xf32>, vector<10x16xf32>, vector<10x8xf32> -> vector<10x32xf32>
    %c0_13 = arith.constant 0 : index
    %c0_14 = arith.constant 0 : index
    %19 = vector.load %arg2[%c0_13, %c0_14] : memref<32x128xf32, #tpu.memory_space<vmem>>, vector<32x128xf32>
    %cst_15 = arith.constant dense<0.000000e+00> : vector<10x128xf32>
    %20 = tpu.matmul %18, %19, %cst_15 {dimension_numbers = #tpu.dot_dimension_numbers<[1], [0], [0], [1], [0, 0, 1, 1], [], []>} : vector<10x32xf32>, vector<32x128xf32>, vector<10x128xf32> -> vector<10x128xf32>
    %21 = vector.broadcast %0 : vector<1x128xf32> to vector<10x128xf32>
    %22 = arith.addf %20, %21 : vector<10x128xf32>
    %cst_16 = arith.constant 0.000000e+00 : f32
    %23 = vector.broadcast %cst_16 : f32 to vector<10x128xf32>
    %24 = arith.cmpf oge, %22, %23 : vector<10x128xf32>
    %cst_17 = arith.constant 2.000000e-01 : f32
    %25 = vector.broadcast %cst_17 : f32 to vector<10x128xf32>
    %26 = arith.mulf %25, %22 : vector<10x128xf32>
    %27 = arith.select %24, %22, %26 : vector<10x128xi1>, vector<10x128xf32>
    %28 = tpu.iota {dimensions = array<i32: 0>} : vector<10x1xi32>
    %c1_i32 = arith.constant 1 : i32
    %29 = arith.subi %11, %c1_i32 : i32
    %30 = vector.broadcast %29 : i32 to vector<10x1xi32>
    %31 = arith.addi %28, %30 : vector<10x1xi32>
    %c0_i32_18 = arith.constant 0 : i32
    %32 = vector.broadcast %c0_i32_18 : i32 to vector<10x1xi32>
    %33 = arith.cmpi sge, %31, %32 : vector<10x1xi32>
    %c8_i32_19 = arith.constant 8 : i32
    %34 = vector.broadcast %c8_i32_19 : i32 to vector<10x1xi32>
    %35 = arith.cmpi slt, %31, %34 : vector<10x1xi32>
    %36 = arith.andi %33, %35 : vector<10x1xi1>
    %cst_20 = arith.constant 0.000000e+00 : f32
    %37 = vector.shape_cast %36 : vector<10x1xi1> to vector<10x1xi1>
    %38 = vector.broadcast %37 : vector<10x1xi1> to vector<10x128xi1>
    %39 = vector.broadcast %cst_20 : f32 to vector<10x128xf32>
    %40 = arith.select %38, %27, %39 : vector<10x128xi1>, vector<10x128xf32>
    %41 = vector.extract_strided_slice %40 {offsets = [0, 0], sizes = [8, 128], strides = [1, 1]} : vector<10x128xf32> to vector<8x128xf32>
    %42 = vector.extract_strided_slice %40 {offsets = [1, 0], sizes = [8, 128], strides = [1, 1]} : vector<10x128xf32> to vector<8x128xf32>
    %43 = vector.extract_strided_slice %40 {offsets = [2, 0], sizes = [8, 128], strides = [1, 1]} : vector<10x128xf32> to vector<8x128xf32>
    %44 = tpu.concatenate %41, %42, %43 in 1 : vector<8x128xf32>, vector<8x128xf32>, vector<8x128xf32> -> vector<8x384xf32>
    %c0_21 = arith.constant 0 : index
    %c0_22 = arith.constant 0 : index
    %45 = vector.load %arg4[%c0_21, %c0_22] : memref<384x128xf32, #tpu.memory_space<vmem>>, vector<384x128xf32>
    %cst_23 = arith.constant dense<0.000000e+00> : vector<8x128xf32>
    %46 = tpu.matmul %44, %45, %cst_23 {dimension_numbers = #tpu.dot_dimension_numbers<[1], [0], [0], [1], [0, 0, 1, 1], [], []>} : vector<8x384xf32>, vector<384x128xf32>, vector<8x128xf32> -> vector<8x128xf32>
    %47 = vector.broadcast %1 : vector<1x128xf32> to vector<8x128xf32>
    %48 = arith.addf %46, %47 : vector<8x128xf32>
    %cst_24 = arith.constant 0.000000e+00 : f32
    %49 = vector.broadcast %cst_24 : f32 to vector<8x128xf32>
    %50 = arith.maximumf %48, %49 : vector<8x128xf32>
    %c0_25 = arith.constant 0 : index
    %c0_26 = arith.constant 0 : index
    %51 = vector.load %arg6[%c0_25, %c0_26] : memref<128x128xf32, #tpu.memory_space<vmem>>, vector<128x128xf32>
    %cst_27 = arith.constant dense<0.000000e+00> : vector<8x128xf32>
    %52 = tpu.matmul %50, %51, %cst_27 {dimension_numbers = #tpu.dot_dimension_numbers<[1], [0], [0], [1], [0, 0, 1, 1], [], []>} : vector<8x128xf32>, vector<128x128xf32>, vector<8x128xf32> -> vector<8x128xf32>
    %53 = vector.broadcast %2 : vector<1x128xf32> to vector<8x128xf32>
    %54 = arith.addf %52, %53 : vector<8x128xf32>
    %55 = vector.extract_strided_slice %40 {offsets = [1, 0], sizes = [8, 128], strides = [1, 1]} : vector<10x128xf32> to vector<8x128xf32>
    %56 = arith.addf %55, %54 : vector<8x128xf32>
    %c4_i32 = arith.constant 4 : i32
    %57 = arith.addi %c4_i32, %11 : i32
    %c0_28 = arith.constant 0 : index
    %58 = arith.index_cast %57 : i32 to index
    %c0_29 = arith.constant 0 : index
    %59 = vector.load %arg8[%c0_28, %58, %c0_29] : memref<1x16x128xf32, #tpu.memory_space<vmem>>, vector<1x8x128xf32>
    %60 = vector.shape_cast %59 : vector<1x8x128xf32> to vector<8x128xf32>
    %61 = vector.shape_cast %56 : vector<8x128xf32> to vector<1x8x128xf32>
    tpu.vector_store %arg8[%c0_28, %58, %c0_29], %61 {strides = array<i32>} : memref<1x16x128xf32, #tpu.memory_space<vmem>>, vector<1x8x128xf32>,
    %c1_i32_30 = arith.constant 1 : i32
    return
  }
  func.func @transform_0(%arg0: i32) -> (i32, i32, i32) {
    %c0_i32 = arith.constant 0 : i32
    %c0_i32_0 = arith.constant 0 : i32
    %c0_i32_1 = arith.constant 0 : i32
    return %arg0, %c0_i32, %c0_i32_0 : i32, i32, i32
  }
  func.func @transform_1(%arg0: i32) -> (i32, i32) {
    %c0_i32 = arith.constant 0 : i32
    %c0_i32_0 = arith.constant 0 : i32
    %c0_i32_1 = arith.constant 0 : i32
    return %c0_i32, %c0_i32_0 : i32, i32
  }
  func.func @transform_2(%arg0: i32) -> (i32, i32) {
    %c0_i32 = arith.constant 0 : i32
    %c0_i32_0 = arith.constant 0 : i32
    %c0_i32_1 = arith.constant 0 : i32
    return %c0_i32, %c0_i32_0 : i32, i32
  }
  func.func @transform_3(%arg0: i32) -> (i32, i32) {
    %c0_i32 = arith.constant 0 : i32
    %c0_i32_0 = arith.constant 0 : i32
    %c0_i32_1 = arith.constant 0 : i32
    return %c0_i32, %c0_i32_0 : i32, i32
  }
  func.func @transform_4(%arg0: i32) -> (i32, i32) {
    %c0_i32 = arith.constant 0 : i32
    %c0_i32_0 = arith.constant 0 : i32
    %c0_i32_1 = arith.constant 0 : i32
    return %c0_i32, %c0_i32_0 : i32, i32
  }
  func.func @transform_5(%arg0: i32) -> (i32, i32) {
    %c0_i32 = arith.constant 0 : i32
    %c0_i32_0 = arith.constant 0 : i32
    %c0_i32_1 = arith.constant 0 : i32
    return %c0_i32, %c0_i32_0 : i32, i32
  }
  func.func @transform_6(%arg0: i32) -> (i32, i32) {
    %c0_i32 = arith.constant 0 : i32
    %c0_i32_0 = arith.constant 0 : i32
    %c0_i32_1 = arith.constant 0 : i32
    return %c0_i32, %c0_i32_0 : i32, i32
  }
  func.func @transform_7(%arg0: i32) -> (i32, i32, i32) {
    %c0_i32 = arith.constant 0 : i32
    %c0_i32_0 = arith.constant 0 : i32
    %c0_i32_1 = arith.constant 0 : i32
    return %arg0, %c0_i32, %c0_i32_0 : i32, i32, i32
  }
}

</mosaic_0001>

<llo_original>
// kernel: tpu_custom_call.1
$region0: #{tpu_custom_call.1}
  #allocation0 [shape = 'u32[]', space=smem, size = 0x4, offset = 0x4, fixed_abs, tag = 'smem constant byte address 0x4 - core index']
  #allocation1 [shape = 'u32[72,128]{1,0:T(1,128)}', space=vmem, size = 0x9000, scoped, tag = 'internal scratch']
  %s0 = inlined_call_operand.vmem [shape: f32[2,12,16], index: 0, kind: input, shape index: {}]
  %s1 = inlined_call_operand.vmem [shape: f32[32,128], index: 1, kind: input, shape index: {}]
  %s2 = inlined_call_operand.vmem [shape: f32[1,128], index: 2, kind: input, shape index: {}]
  %s3 = inlined_call_operand.hbm [shape: f32[384,128], index: 3, kind: input, shape index: {}]
  %s4 = inlined_call_operand.vmem [shape: f32[1,128], index: 4, kind: input, shape index: {}]
  %s5 = inlined_call_operand.hbm [shape: f32[128,128], index: 5, kind: input, shape index: {}]
  %s6 = inlined_call_operand.vmem [shape: f32[1,128], index: 6, kind: input, shape index: {}]
  %s7 = inlined_call_operand.hbm [shape: f32[2,16,128], index: 7, kind: output, shape index: {}]
  %s8 = sld [smem:[#allocation0]]
  $region69: #{tpu_custom_call.1} parent=0
    _
  %s10 = ssub.s32 1, %s8
  %s11 = scalar_select 0, %s10, %s8
  $region1: #{tpu_custom_call.1} parent=0
    #allocation2 [shape = 'u8[196608]{0}', space=vmem, size = 0x30000, scoped, tag = 'input window, operand 3, single buffered']
    #allocation3 [shape = 's32[2]{0}', space=sflag, size = 0x8, scoped, tag = 'scoped memory for tpu_custom_call.1']
    #allocation4 [shape = 's32[2]{0}', space=sflag, size = 0x8, scoped, tag = 'scoped memory for tpu_custom_call.1']
    #allocation5 [shape = 'u8[65536]{0}', space=vmem, size = 0x10000, scoped, tag = 'input window, operand 5, single buffered']
    #allocation6 [shape = 's32[1]{0}', space=sflag, size = 0x4, scoped, tag = 'scoped memory for tpu_custom_call.1']
    #allocation7 [shape = 'u8[16384]{0}', space=vmem, size = 0x4000, scoped, tag = 'output window, operand 0']
    %12 = vsyncpa [#allocation3], 0
    %13 = vsyncpa [#allocation6], 0
    %14 = vsyncpa [#allocation4], 0
    %s15 = scalar_lea.sflag [#allocation4], 1
    %16 = vsyncpa %s15, 0
    loop: start=0, step=1, limit=4
    $region2: #{tpu_custom_call.1} parent=1 // loop_pre_header
      _
    $region3: #{tpu_custom_call.1} parent=1 // loop_header
      %s18 = sphi 0, %s22
      %p19 = scmp.ge.s32.totalorder %s18, 4
      %s28 = sphi 0, %s30
      %s31 = sphi 0, %s28
      %s32 = sphi 0, %s31
      %s48 = sphi 0, %s32
      %s52 = sphi 0, %s52
      %s54 = sphi 0, %s52
      %s55 = sphi 0, %s54
      %s69 = sphi 0, %s55
      %s73 = sphi 0, %s73
      %s75 = sphi 0, %s73
      %s76 = sphi 0, %s75
      %s90 = sphi 0, %s76
      %s94 = sphi 0, %s94
      %s96 = sphi 0, %s94
      %s97 = sphi 0, %s96
      %s111 = sphi 0, %s97
      %s115 = sphi 0, %s115
      %s117 = sphi 0, %s115
      %s118 = sphi 0, %s117
      %s132 = sphi 0, %s118
      %s136 = sphi 0, %s136
      %s138 = sphi 0, %s136
      %s139 = sphi 0, %s138
      %s153 = sphi 0, %s139
      %s157 = sphi 0, %s157
      %s159 = sphi 0, %s157
      %s160 = sphi 0, %s159
      %s174 = sphi 0, %s160
      %s180 = sphi 0, %s182
      %s183 = sphi 0, %s180
      %s184 = sphi 0, %s183
      %s200 = sphi 0, %s184
    $region4: #{tpu_custom_call.1} parent=1 // loop_header_branch
      %21 = sbr.rel (%p19) target = $region8
    $region5: #{tpu_custom_call.1} parent=1 // loop_body
      %s23 = ssub.s32 %s18, 1
      %s24 = ssub.s32 %s18, 2
      %s25 = sadd.s32 %s18, 1
      %s26 = ssub.s32 %s18, %s25
      %p27 = scmp.eq.s32.totalorder %s26, 0
      %s29 = sadd.s32 %s28, 1
      %s30 = scalar_select %p27, %s28, %s29
      %p33 = pneg %p27
      %p34 = scmp.eq.s32.totalorder %s18, 1
      %p35 = por %p33, %p34
      %p36 = scmp.ne.s32.totalorder %s28, %s31
      %p37 = scmp.eq.s32.totalorder %s18, 0
      %p38 = por %p36, %p37
      %p39 = scmp.ne.s32.totalorder %s28, %s31
      %p40 = scmp.eq.s32.totalorder %s23, 1
      %p41 = por %p39, %p40
      %p42 = scmp.ne.s32.totalorder %s31, %s32
      %p43 = scmp.eq.s32.totalorder %s23, 0
      %p44 = por %p42, %p43
      %p45 = scmp.ne.s32.totalorder %s31, %s32
      %p46 = scmp.eq.s32.totalorder %s24, 1
      %p47 = por %p45, %p46
      %p49 = scmp.ne.s32.totalorder %s32, %s48
      %p50 = scmp.eq.s32.totalorder %s24, 0
      %p51 = por %p49, %p50
      %s53 = sadd.s32 %s52, 1
      %p56 = scmp.eq.s32.totalorder %s18, 1
      %p57 = scmp.ne.s32.totalorder %s52, %s54
      %p58 = scmp.eq.s32.totalorder %s18, 0
      %p59 = por %p57, %p58
      %p60 = scmp.ne.s32.totalorder %s52, %s54
      %p61 = scmp.eq.s32.totalorder %s23, 1
      %p62 = por %p60, %p61
      %p63 = scmp.ne.s32.totalorder %s54, %s55
      %p64 = scmp.eq.s32.totalorder %s23, 0
      %p65 = por %p63, %p64
      %p66 = scmp.ne.s32.totalorder %s54, %s55
      %p67 = scmp.eq.s32.totalorder %s24, 1
      %p68 = por %p66, %p67
      %p70 = scmp.ne.s32.totalorder %s55, %s69
      %p71 = scmp.eq.s32.totalorder %s24, 0
      %p72 = por %p70, %p71
      %s74 = sadd.s32 %s73, 1
      %p77 = scmp.eq.s32.totalorder %s18, 1
      %p78 = scmp.ne.s32.totalorder %s73, %s75
      %p79 = scmp.eq.s32.totalorder %s18, 0
      %p80 = por %p78, %p79
      %p81 = scmp.ne.s32.totalorder %s73, %s75
      %p82 = scmp.eq.s32.totalorder %s23, 1
      %p83 = por %p81, %p82
      %p84 = scmp.ne.s32.totalorder %s75, %s76
      %p85 = scmp.eq.s32.totalorder %s23, 0
      %p86 = por %p84, %p85
      %p87 = scmp.ne.s32.totalorder %s75, %s76
      %p88 = scmp.eq.s32.totalorder %s24, 1
      %p89 = por %p87, %p88
      %p91 = scmp.ne.s32.totalorder %s76, %s90
      %p92 = scmp.eq.s32.totalorder %s24, 0
      %p93 = por %p91, %p92
      %s95 = sadd.s32 %s94, 1
      %p98 = scmp.eq.s32.totalorder %s18, 1
      %p99 = scmp.ne.s32.totalorder %s94, %s96
      %p100 = scmp.eq.s32.totalorder %s18, 0
      %p101 = por %p99, %p100
      %p102 = scmp.ne.s32.totalorder %s94, %s96
      %p103 = scmp.eq.s32.totalorder %s23, 1
      %p104 = por %p102, %p103
      %p105 = scmp.ne.s32.totalorder %s96, %s97
      %p106 = scmp.eq.s32.totalorder %s23, 0
      %p107 = por %p105, %p106
      %p108 = scmp.ne.s32.totalorder %s96, %s97
      %p109 = scmp.eq.s32.totalorder %s24, 1
      %p110 = por %p108, %p109
      %p112 = scmp.ne.s32.totalorder %s97, %s111
      %p113 = scmp.eq.s32.totalorder %s24, 0
      %p114 = por %p112, %p113
      %s116 = sadd.s32 %s115, 1
      %p119 = scmp.eq.s32.totalorder %s18, 1
      %p120 = scmp.ne.s32.totalorder %s115, %s117
      %p121 = scmp.eq.s32.totalorder %s18, 0
      %p122 = por %p120, %p121
      %p123 = scmp.ne.s32.totalorder %s115, %s117
      %p124 = scmp.eq.s32.totalorder %s23, 1
      %p125 = por %p123, %p124
      %p126 = scmp.ne.s32.totalorder %s117, %s118
      %p127 = scmp.eq.s32.totalorder %s23, 0
      %p128 = por %p126, %p127
      %p129 = scmp.ne.s32.totalorder %s117, %s118
      %p130 = scmp.eq.s32.totalorder %s24, 1
      %p131 = por %p129, %p130
      %p133 = scmp.ne.s32.totalorder %s118, %s132
      %p134 = scmp.eq.s32.totalorder %s24, 0
      %p135 = por %p133, %p134
      %s137 = sadd.s32 %s136, 1
      %p140 = scmp.eq.s32.totalorder %s18, 1
      %p141 = scmp.ne.s32.totalorder %s136, %s138
      %p142 = scmp.eq.s32.totalorder %s18, 0
      %p143 = por %p141, %p142
      %p144 = scmp.ne.s32.totalorder %s136, %s138
      %p145 = scmp.eq.s32.totalorder %s23, 1
      %p146 = por %p144, %p145
      %p147 = scmp.ne.s32.totalorder %s138, %s139
      %p148 = scmp.eq.s32.totalorder %s23, 0
      %p149 = por %p147, %p148
      %p150 = scmp.ne.s32.totalorder %s138, %s139
      %p151 = scmp.eq.s32.totalorder %s24, 1
      %p152 = por %p150, %p151
      %p154 = scmp.ne.s32.totalorder %s139, %s153
      %p155 = scmp.eq.s32.totalorder %s24, 0
      %p156 = por %p154, %p155
      %s158 = sadd.s32 %s157, 1
      %p161 = scmp.eq.s32.totalorder %s18, 1
      %p162 = scmp.ne.s32.totalorder %s157, %s159
      %p163 = scmp.eq.s32.totalorder %s18, 0
      %p164 = por %p162, %p163
      %p165 = scmp.ne.s32.totalorder %s157, %s159
      %p166 = scmp.eq.s32.totalorder %s23, 1
      %p167 = por %p165, %p166
      %p168 = scmp.ne.s32.totalorder %s159, %s160
      %p169 = scmp.eq.s32.totalorder %s23, 0
      %p170 = por %p168, %p169
      %p171 = scmp.ne.s32.totalorder %s159, %s160
      %p172 = scmp.eq.s32.totalorder %s24, 1
      %p173 = por %p171, %p172
      %p175 = scmp.ne.s32.totalorder %s160, %s174
      %p176 = scmp.eq.s32.totalorder %s24, 0
      %p177 = por %p175, %p176
      %s178 = ssub.s32 %s18, %s25
      %p179 = scmp.eq.s32.totalorder %s178, 0
      %s181 = sadd.s32 %s180, 1
      %s182 = scalar_select %p179, %s180, %s181
      %p185 = pneg %p179
      %p186 = scmp.eq.s32.totalorder %s18, 1
      %p187 = por %p185, %p186
      %p188 = scmp.ne.s32.totalorder %s180, %s183
      %p189 = scmp.eq.s32.totalorder %s18, 0
      %p190 = por %p188, %p189
      %p191 = scmp.ne.s32.totalorder %s180, %s183
      %p192 = scmp.eq.s32.totalorder %s23, 1
      %p193 = por %p191, %p192
      %p194 = scmp.ne.s32.totalorder %s183, %s184
      %p195 = scmp.eq.s32.totalorder %s23, 0
      %p196 = por %p194, %p195
      %p197 = scmp.ne.s32.totalorder %s183, %s184
      %p198 = scmp.eq.s32.totalorder %s24, 1
      %p199 = por %p197, %p198
      %p201 = scmp.ne.s32.totalorder %s184, %s200
      %p202 = scmp.eq.s32.totalorder %s24, 0
      %p203 = por %p201, %p202
      %p204 = scmp.le.s32.totalorder 1, %s18
      %p205 = scmp.lt.s32.totalorder %s18, 3
      %p206 = pnand %p204, %p205
      %p207 = pneg %p206
      // Predicated region
      $region9: #{tpu_custom_call.1} parent=5 // pred_check
        _
      $region10: #{tpu_custom_call.1} parent=5 // pred_check_branch
        %209 = sbr.rel (%p206) target = $region12
      $region11: #{tpu_custom_call.1} parent=5 // pred_region
        %s210 = ssub.s32 %s18, 1
        // Predicated region
        $region13: #{tpu_custom_call.1} parent=11 // pred_check
          %p211 = pneg %p65
        $region14: #{tpu_custom_call.1} parent=11 // pred_check_branch
          %213 = sbr.rel (%p211) target = $region16
        $region15: #{tpu_custom_call.1} parent=11 // pred_region
          _
        $region16: #{tpu_custom_call.1} parent=11 // pred_fallthru
          _
        // Predicated region
        $region17: #{tpu_custom_call.1} parent=11 // pred_check
          %p214 = pneg %p86
        $region18: #{tpu_custom_call.1} parent=11 // pred_check_branch
          %216 = sbr.rel (%p214) target = $region20
        $region19: #{tpu_custom_call.1} parent=11 // pred_region
          _
        $region20: #{tpu_custom_call.1} parent=11 // pred_fallthru
          _
        // Predicated region
        $region21: #{tpu_custom_call.1} parent=11 // pred_check
          %p217 = pneg %p107
        $region22: #{tpu_custom_call.1} parent=11 // pred_check_branch
          %219 = sbr.rel (%p217) target = $region24
        $region23: #{tpu_custom_call.1} parent=11 // pred_region
          %221 = vsyncadd [#allocation3], 0
          %s222 = sshll.u32 %s3, 4
          %s223 = int_to_ptr.hbm [resolvable:$true] %s222
          %s224 = sshll.u32 [#allocation2], 4
          %s225 = int_to_ptr.vmem [resolvable:$true] %s224
          %230 = dma.hbm_to_vmem [thread:$0]  %s223, 6144, %s225, [#allocation3], 128, 128, 8
        $region24: #{tpu_custom_call.1} parent=11 // pred_fallthru
          _
        // Predicated region
        $region25: #{tpu_custom_call.1} parent=11 // pred_check
          %p231 = pneg %p128
        $region26: #{tpu_custom_call.1} parent=11 // pred_check_branch
          %233 = sbr.rel (%p231) target = $region28
        $region27: #{tpu_custom_call.1} parent=11 // pred_region
          _
        $region28: #{tpu_custom_call.1} parent=11 // pred_fallthru
          _
        // Predicated region
        $region29: #{tpu_custom_call.1} parent=11 // pred_check
          %p234 = pneg %p149
        $region30: #{tpu_custom_call.1} parent=11 // pred_check_branch
          %236 = sbr.rel (%p234) target = $region32
        $region31: #{tpu_custom_call.1} parent=11 // pred_region
          %238 = vsyncadd [#allocation6], 0
          %s239 = sshll.u32 %s5, 4
          %s240 = int_to_ptr.hbm [resolvable:$true] %s239
          %s241 = sshll.u32 [#allocation5], 4
          %s242 = int_to_ptr.vmem [resolvable:$true] %s241
          %247 = dma.hbm_to_vmem [thread:$0]  %s240, 2048, %s242, [#allocation6], 128, 128, 8
        $region32: #{tpu_custom_call.1} parent=11 // pred_fallthru
          _
        // Predicated region
        $region33: #{tpu_custom_call.1} parent=11 // pred_check
          %p248 = pneg %p170
        $region34: #{tpu_custom_call.1} parent=11 // pred_check_branch
          %250 = sbr.rel (%p248) target = $region36
        $region35: #{tpu_custom_call.1} parent=11 // pred_region
          _
        $region36: #{tpu_custom_call.1} parent=11 // pred_fallthru
          _
      $region12: #{tpu_custom_call.1} parent=5 // pred_fallthru
        _
      %p251 = scmp.lt.s32.totalorder %s18, 2
      // Predicated region
      $region37: #{tpu_custom_call.1} parent=5 // pred_check
        %p252 = pneg %p251
      $region38: #{tpu_custom_call.1} parent=5 // pred_check_branch
        %254 = sbr.rel (%p252) target = $region40
      $region39: #{tpu_custom_call.1} parent=5 // pred_region
        // Predicated region
        $region41: #{tpu_custom_call.1} parent=39 // pred_check
          %p255 = pneg %p38
        $region42: #{tpu_custom_call.1} parent=39 // pred_check_branch
          %257 = sbr.rel (%p255) target = $region44
        $region43: #{tpu_custom_call.1} parent=39 // pred_region
          %p258 = scmp.lt.s32.totalorder %s18, 1
          %s259 = scalar_select %p258, %s18, 1
          %s260 = smul.addr %s259, 2
          %s261 = smul.addr %s260, 8
          %s262 = scalar_lea.vmem %s0, %s261
        $region44: #{tpu_custom_call.1} parent=39 // pred_fallthru
          _
      $region40: #{tpu_custom_call.1} parent=5 // pred_fallthru
        _
      %p263 = scmp.le.s32.totalorder 1, %s18
      %p264 = scmp.lt.s32.totalorder %s18, 3
      %p265 = pnand %p263, %p264
      %p266 = pneg %p265
      // Predicated region
      $region45: #{tpu_custom_call.1} parent=5 // pred_check
        _
      $region46: #{tpu_custom_call.1} parent=5 // pred_check_branch
        %268 = sbr.rel (%p265) target = $region48
      $region47: #{tpu_custom_call.1} parent=5 // pred_region
        %s269 = ssub.s32 %s18, 1
        // Predicated region
        $region49: #{tpu_custom_call.1} parent=47 // pred_check
          %p270 = pneg %p107
        $region50: #{tpu_custom_call.1} parent=47 // pred_check_branch
          %272 = sbr.rel (%p270) target = $region52
        $region51: #{tpu_custom_call.1} parent=47 // pred_region
          %274 = dma.done [#allocation3], 6144
        $region52: #{tpu_custom_call.1} parent=47 // pred_fallthru
          _
        // Predicated region
        $region53: #{tpu_custom_call.1} parent=47 // pred_check
          %p275 = pneg %p149
        $region54: #{tpu_custom_call.1} parent=47 // pred_check_branch
          %277 = sbr.rel (%p275) target = $region56
        $region55: #{tpu_custom_call.1} parent=47 // pred_region
          %279 = dma.done [#allocation6], 2048
        $region56: #{tpu_custom_call.1} parent=47 // pred_fallthru
          _
        %p280 = scmp.lt.s32.totalorder %s23, 1
        %s281 = scalar_select %p280, %s23, 1
        %s282 = smul.addr %s281, 2
        %s283 = smul.addr %s282, 8
        %s284 = scalar_lea.vmem %s0, %s283
        %p285 = pneg %p44
        %p286 = pneg %p41
        %p287 = pneg %p65
        %p288 = pneg %p62
        %p289 = pneg %p86
        %p290 = pneg %p83
        %p291 = pneg %p107
        %p292 = pneg %p104
        %p293 = pneg %p128
        %p294 = pneg %p125
        %p295 = pneg %p149
        %p296 = pneg %p146
        %p297 = pneg %p170
        %p298 = pneg %p167
        %p299 = pneg %p196
        %p300 = pneg %p193
        %s301 = sand.u32 %s183, 1
        %s302 = scalar_lea.sflag [#allocation4], %s301
        %s303 = sand.u32 %s183, 1
        %s304 = smul.addr %s303, 16
        %s305 = scalar_lea.vmem [#allocation7], %s304
        %p306 = scmp.lt.s32.totalorder %s23, 1
        %s307 = scalar_select %p306, %s23, 1
        %s308 = smul.addr %s307, 2
        %s309 = smul.addr %s308, 8
        %s310 = scalar_lea.vmem %s0, %s309
        %v311 = vld [vmem:[%s2] sm:$0x1]
        %v312 = vld [vmem:[%s4] sm:$0x1]
        %v313 = vld [vmem:[%s6] sm:$0x1]
        %314 = vst [vmem:[%s305] sm:$0xf] 0.0
        %315 = vst [vmem:[%s305 + $0xc] sm:$0xf] 0.0
        %v316 = vld [vmem:[%s310] sm:$0xff]
        %v317 = vld [vmem:[%s310 + $0x8] sm:$0xf]
        %320 = vrot.lane.b32.xlu0 %v316, 120
        %v321 = vpop.permute.xlu0 %320
        %322 = vrot.lane.b32.xlu0 %v317, 120
        %v323 = vpop.permute.xlu0 %322
        %vm326 = vcmask 1046528
        %v327 = vrot.slane %v316, 1
        %v328 = vrot.slane %v317, 1
        %v329 = vsel %vm326, %v327, %v328
        %330 = vrot.lane.b32.xlu0 %v329, 8
        %v331 = vpop.permute.xlu0 %330
        %332 = vrot.lane.b32.xlu0 %v328, 8
        %v333 = vpop.permute.xlu0 %332
        %vm336 = vcmask 1045504
        %v337 = vrot.slane %v316, 2
        %v338 = vrot.slane %v317, 2
        %v339 = vsel %vm336, %v337, %v338
        %340 = vrot.lane.b32.xlu0 %v339, 24
        %v341 = vpop.permute.xlu0 %340
        %342 = vrot.lane.b32.xlu0 %v338, 24
        %v343 = vpop.permute.xlu0 %342
        %vm346 = vcmask 64512
        %v347 = vsel %vm346, %v321, %v331
        %v348 = vsel %vm346, %v323, %v333
        %vm349 = vcmask 195584
        %v350 = vsel %vm349, %v347, %v341
        %v351 = vsel %vm349, %v348, %v343
        %v352 = vld [vmem:[%s1] sm:$0xff]
        %v353 = vld [vmem:[%s1 + $0x8] sm:$0xff]
        %v354 = vld [vmem:[%s1 + $0x10] sm:$0xff]
        %v355 = vld [vmem:[%s1 + $0x18] sm:$0xff]
        %v357 = vperm.slane %v311, 0
        %vm359 = vcmask 261120
        %v361 = vsel %vm359, %v350, 0
        %v364 = vsel %vm359, %v351, 0
        %366 = vmatpush.msra.mxu0 0.0
        %367 = vmatpush.msra.mxu0 0.0
        %368 = vmatpush.msra.mxu0 0.0
        %369 = vmatpush.msra.mxu0 0.0
        %370 = vmatpush.msra.mxu0 0.0
        %371 = vmatpush.msra.mxu0 0.0
        %372 = vmatpush.msra.mxu0 0.0
        %373 = vmatpush.msra.mxu0 0.0
        %374 = vmatpush.msra.mxu0 0.0
        %375 = vmatpush.msra.mxu0 0.0
        %376 = vmatpush.msra.mxu0 0.0
        %377 = vmatpush.msra.mxu0 0.0
        %378 = vmatpush.msra.mxu0 %v355
        %379 = vmatpush.msra.mxu0 %v354
        %380 = vmatpush.msra.mxu0 %v353
        %381 = vmatpush.msra.mxu0 %v352
        %382 = vmatmul.f32.gmra.mxu0 %v361
        %v383 = vpop.f32.mrf.mxu0
        %v384 = vadd.f32 %v357, %v383
        %385 = vmatmul.f32.gmra.mxu0 %v364
        %v386 = vpop.f32.mrf.mxu0
        %v387 = vadd.f32 %v357, %v386
        %388 = vdwg.mxu0
        %vm389 = vcmp.ge.f32.partialorder %v384, 0.0
        %vm390 = vcmp.ge.f32.partialorder %v387, 0.0
        %v391 = vmul.f32 %v384, 0.2
        %v392 = vmul.f32 %v387, 0.2
        %v393 = vsel %vm389, %v384, %v391
        %v394 = vsel %vm390, %v387, %v392
        %v395 = vlaneseq
        %v396 = vshrl.u32 %v395, 7
        %v397 = vadd.s32 %v396, 8
        %v398 = vadd.s32 %v396, 4294967295
        %v399 = vadd.s32 %v397, 4294967295
        %vm400 = vcmp.ge.s32.totalorder %v398, 0
        %vm401 = vcmp.ge.s32.totalorder %v399, 0
        %vm402 = vcmp.lt.s32.totalorder %v398, 8
        %vm403 = vcmp.lt.s32.totalorder %v399, 8
        %vm404 = vmand %vm400, %vm402
        %vm405 = vmand %vm401, %vm403
        %v406 = vsel %vm404, 1, 0
        %v407 = vsel %vm405, 1, 0
        %vm408 = vcmp.eq.s32.totalorder %v406, 1
        %vm409 = vcmp.eq.s32.totalorder %v407, 1
        %v410 = vsel %vm408, %v393, 0.0
        %v411 = vsel %vm409, %v394, 0.0
        %v414 = vrot.slane %v410, 1
        %v415 = vrot.slane %v411, 1
        %v416 = vsel %vm326, %v414, %v415
        %v418 = vrot.slane %v410, 2
        %v419 = vrot.slane %v411, 2
        %v420 = vsel %vm336, %v418, %v419
        %v422 = vld [vmem:[#allocation2] sm:$0xff]
        %v423 = vld [vmem:[#allocation2 + $0x8] sm:$0xff]
        %v424 = vld [vmem:[#allocation2 + $0x10] sm:$0xff]
        %v425 = vld [vmem:[#allocation2 + $0x18] sm:$0xff]
        %v426 = vld [vmem:[#allocation2 + $0x20] sm:$0xff]
        %v427 = vld [vmem:[#allocation2 + $0x28] sm:$0xff]
        %v428 = vld [vmem:[#allocation2 + $0x30] sm:$0xff]
        %v429 = vld [vmem:[#allocation2 + $0x38] sm:$0xff]
        %v430 = vld [vmem:[#allocation2 + $0x40] sm:$0xff]
        %v431 = vld [vmem:[#allocation2 + $0x48] sm:$0xff]
        %v432 = vld [vmem:[#allocation2 + $0x50] sm:$0xff]
        %v433 = vld [vmem:[#allocation2 + $0x58] sm:$0xff]
        %v434 = vld [vmem:[#allocation2 + $0x60] sm:$0xff]
        %v435 = vld [vmem:[#allocation2 + $0x68] sm:$0xff]
        %v436 = vld [vmem:[#allocation2 + $0x70] sm:$0xff]
        %v437 = vld [vmem:[#allocation2 + $0x78] sm:$0xff]
        %v438 = vld [vmem:[#allocation2 + $0x80] sm:$0xff]
        %v439 = vld [vmem:[#allocation2 + $0x88] sm:$0xff]
        %v440 = vld [vmem:[#allocation2 + $0x90] sm:$0xff]
        %v441 = vld [vmem:[#allocation2 + $0x98] sm:$0xff]
        %v442 = vld [vmem:[#allocation2 + $0xa0] sm:$0xff]
        %v443 = vld [vmem:[#allocation2 + $0xa8] sm:$0xff]
        %v444 = vld [vmem:[#allocation2 + $0xb0] sm:$0xff]
        %v445 = vld [vmem:[#allocation2 + $0xb8] sm:$0xff]
        %v446 = vld [vmem:[#allocation2 + $0xc0] sm:$0xff]
        %v447 = vld [vmem:[#allocation2 + $0xc8] sm:$0xff]
        %v448 = vld [vmem:[#allocation2 + $0xd0] sm:$0xff]
        %v449 = vld [vmem:[#allocation2 + $0xd8] sm:$0xff]
        %v450 = vld [vmem:[#allocation2 + $0xe0] sm:$0xff]
        %v451 = vld [vmem:[#allocation2 + $0xe8] sm:$0xff]
        %v452 = vld [vmem:[#allocation2 + $0xf0] sm:$0xff]
        %v453 = vld [vmem:[#allocation2 + $0xf8] sm:$0xff]
        %v454 = vld [vmem:[#allocation2 + $0x100] sm:$0xff]
        %v455 = vld [vmem:[#allocation2 + $0x108] sm:$0xff]
        %v456 = vld [vmem:[#allocation2 + $0x110] sm:$0xff]
        %v457 = vld [vmem:[#allocation2 + $0x118] sm:$0xff]
        %v458 = vld [vmem:[#allocation2 + $0x120] sm:$0xff]
        %v459 = vld [vmem:[#allocation2 + $0x128] sm:$0xff]
        %v460 = vld [vmem:[#allocation2 + $0x130] sm:$0xff]
        %v461 = vld [vmem:[#allocation2 + $0x138] sm:$0xff]
        %v462 = vld [vmem:[#allocation2 + $0x140] sm:$0xff]
        %v463 = vld [vmem:[#allocation2 + $0x148] sm:$0xff]
        %v464 = vld [vmem:[#allocation2 + $0x150] sm:$0xff]
        %v465 = vld [vmem:[#allocation2 + $0x158] sm:$0xff]
        %v466 = vld [vmem:[#allocation2 + $0x160] sm:$0xff]
        %v467 = vld [vmem:[#allocation2 + $0x168] sm:$0xff]
        %v468 = vld [vmem:[#allocation2 + $0x170] sm:$0xff]
        %v469 = vld [vmem:[#allocation2 + $0x178] sm:$0xff]
        %v471 = vperm.slane %v312, 0
        %473 = vmatpush.msra.mxu0 %v437
        %474 = vmatpush.msra.mxu0 %v436
        %475 = vmatpush.msra.mxu0 %v435
        %476 = vmatpush.msra.mxu0 %v434
        %477 = vmatpush.msra.mxu0 %v433
        %478 = vmatpush.msra.mxu0 %v432
        %479 = vmatpush.msra.mxu0 %v431
        %480 = vmatpush.msra.mxu0 %v430
        %481 = vmatpush.msra.mxu0 %v429
        %482 = vmatpush.msra.mxu0 %v428
        %483 = vmatpush.msra.mxu0 %v427
        %484 = vmatpush.msra.mxu0 %v426
        %485 = vmatpush.msra.mxu0 %v425
        %486 = vmatpush.msra.mxu0 %v424
        %487 = vmatpush.msra.mxu0 %v423
        %488 = vmatpush.msra.mxu0 %v422
        %489 = vmatmul.f32.gmra.mxu0 %v410
        %v490 = vpop.f32.mrf.mxu0
        %v491 = vadd.f32 %v471, %v490
        %492 = vdwg.mxu0
        %493 = vmatpush.msra.mxu0 %v453
        %494 = vmatpush.msra.mxu0 %v452
        %495 = vmatpush.msra.mxu0 %v451
        %496 = vmatpush.msra.mxu0 %v450
        %497 = vmatpush.msra.mxu0 %v449
        %498 = vmatpush.msra.mxu0 %v448
        %499 = vmatpush.msra.mxu0 %v447
        %500 = vmatpush.msra.mxu0 %v446
        %501 = vmatpush.msra.mxu0 %v445
        %502 = vmatpush.msra.mxu0 %v444
        %503 = vmatpush.msra.mxu0 %v443
        %504 = vmatpush.msra.mxu0 %v442
        %505 = vmatpush.msra.mxu0 %v441
        %506 = vmatpush.msra.mxu0 %v440
        %507 = vmatpush.msra.mxu0 %v439
        %508 = vmatpush.msra.mxu0 %v438
        %509 = vmatmul.f32.gmra.mxu0 %v416
        %v510 = vpop.f32.mrf.mxu0
        %v511 = vadd.f32 %v491, %v510
        %512 = vdwg.mxu0
        %513 = vmatpush.msra.mxu0 %v469
        %514 = vmatpush.msra.mxu0 %v468
        %515 = vmatpush.msra.mxu0 %v467
        %516 = vmatpush.msra.mxu0 %v466
        %517 = vmatpush.msra.mxu0 %v465
        %518 = vmatpush.msra.mxu0 %v464
        %519 = vmatpush.msra.mxu0 %v463
        %520 = vmatpush.msra.mxu0 %v462
        %521 = vmatpush.msra.mxu0 %v461
        %522 = vmatpush.msra.mxu0 %v460
        %523 = vmatpush.msra.mxu0 %v459
        %524 = vmatpush.msra.mxu0 %v458
        %525 = vmatpush.msra.mxu0 %v457
        %526 = vmatpush.msra.mxu0 %v456
        %527 = vmatpush.msra.mxu0 %v455
        %528 = vmatpush.msra.mxu0 %v454
        %529 = vmatmul.f32.gmra.mxu0 %v420
        %v530 = vpop.f32.mrf.mxu0
        %v531 = vadd.f32 %v511, %v530
        %532 = vdwg.mxu0
        %v533 = vmax.f32 %v531, 0.0
        %v534 = vld [vmem:[#allocation5] sm:$0xff]
        %v535 = vld [vmem:[#allocation5 + $0x8] sm:$0xff]
        %v536 = vld [vmem:[#allocation5 + $0x10] sm:$0xff]
        %v537 = vld [vmem:[#allocation5 + $0x18] sm:$0xff]
        %v538 = vld [vmem:[#allocation5 + $0x20] sm:$0xff]
        %v539 = vld [vmem:[#allocation5 + $0x28] sm:$0xff]
        %v540 = vld [vmem:[#allocation5 + $0x30] sm:$0xff]
        %v541 = vld [vmem:[#allocation5 + $0x38] sm:$0xff]
        %v542 = vld [vmem:[#allocation5 + $0x40] sm:$0xff]
        %v543 = vld [vmem:[#allocation5 + $0x48] sm:$0xff]
        %v544 = vld [vmem:[#allocation5 + $0x50] sm:$0xff]
        %v545 = vld [vmem:[#allocation5 + $0x58] sm:$0xff]
        %v546 = vld [vmem:[#allocation5 + $0x60] sm:$0xff]
        %v547 = vld [vmem:[#allocation5 + $0x68] sm:$0xff]
        %v548 = vld [vmem:[#allocation5 + $0x70] sm:$0xff]
        %v549 = vld [vmem:[#allocation5 + $0x78] sm:$0xff]
        %v551 = vperm.slane %v313, 0
        %553 = vmatpush.msra.mxu0 %v549
        %554 = vmatpush.msra.mxu0 %v548
        %555 = vmatpush.msra.mxu0 %v547
        %556 = vmatpush.msra.mxu0 %v546
        %557 = vmatpush.msra.mxu0 %v545
        %558 = vmatpush.msra.mxu0 %v544
        %559 = vmatpush.msra.mxu0 %v543
        %560 = vmatpush.msra.mxu0 %v542
        %561 = vmatpush.msra.mxu0 %v541
        %562 = vmatpush.msra.mxu0 %v540
        %563 = vmatpush.msra.mxu0 %v539
        %564 = vmatpush.msra.mxu0 %v538
        %565 = vmatpush.msra.mxu0 %v537
        %566 = vmatpush.msra.mxu0 %v536
        %567 = vmatpush.msra.mxu0 %v535
        %568 = vmatpush.msra.mxu0 %v534
        %569 = vmatmul.f32.gmra.mxu0 %v533
        %v570 = vpop.f32.mrf.mxu0
        %v571 = vadd.f32 %v551, %v570
        %572 = vdwg.mxu0
        %v574 = vrot.slane %v571, 7
        %v576 = vadd.f32 %v410, %v574
        %v577 = vadd.f32 %v411, %v574
        %578 = vst [vmem:[%s305 + $0x3] sm:$0xfe] %v576
        %579 = vst [vmem:[%s305 + $0xb] sm:$0x1] %v577
        %s580 = sand.u32 %s183, 1
        %s581 = scalar_lea.sflag [#allocation4], %s580
        %s582 = sand.u32 %s183, 1
        %s583 = smul.addr %s582, 16
        %s584 = scalar_lea.vmem [#allocation7], %s583
        // Predicated region
        $region57: #{tpu_custom_call.1} parent=47 // pred_check
          %p585 = pneg %p193
        $region58: #{tpu_custom_call.1} parent=47 // pred_check_branch
          %587 = sbr.rel (%p585) target = $region60
        $region59: #{tpu_custom_call.1} parent=47 // pred_region
          %589 = vsyncadd %s581, 0
          %s590 = smul.addr %s23, 2
          %s591 = smul.addr %s590, 8
          %s592 = scalar_lea.hbm %s7, %s591
          %s593 = sshll.u32 %s584, 4
          %s594 = int_to_ptr.vmem [resolvable:$true] %s593
          %s595 = sshll.u32 %s592, 4
          %s596 = int_to_ptr.hbm [resolvable:$true] %s595
          %601 = dma.vmem_to_hbm [thread:$0]  %s594, 256, %s596, %s581, 128, 128, 8
        $region60: #{tpu_custom_call.1} parent=47 // pred_fallthru
          _
      $region48: #{tpu_custom_call.1} parent=5 // pred_fallthru
        _
      %p602 = scmp.le.s32.totalorder 2, %s18
      // Predicated region
      $region61: #{tpu_custom_call.1} parent=5 // pred_check
        %p603 = pneg %p602
      $region62: #{tpu_custom_call.1} parent=5 // pred_check_branch
        %605 = sbr.rel (%p603) target = $region64
      $region63: #{tpu_custom_call.1} parent=5 // pred_region
        %s606 = ssub.s32 %s18, 2
        // Predicated region
        $region65: #{tpu_custom_call.1} parent=63 // pred_check
          %p607 = pneg %p199
        $region66: #{tpu_custom_call.1} parent=63 // pred_check_branch
          %609 = sbr.rel (%p607) target = $region68
        $region67: #{tpu_custom_call.1} parent=63 // pred_region
          %s610 = sand.u32 %s184, 1
          %s611 = scalar_lea.sflag [#allocation4], %s610
          %s612 = sand.u32 %s184, 1
          %s613 = smul.addr %s612, 16
          %s614 = scalar_lea.vmem [#allocation7], %s613
          %616 = dma.done %s611, 256
        $region68: #{tpu_custom_call.1} parent=63 // pred_fallthru
          _
      $region64: #{tpu_custom_call.1} parent=5 // pred_fallthru
        _
    $region6: #{tpu_custom_call.1} parent=1 // loop_footer
      %s22 = sadd.s32 1, %s18
    $region7: #{tpu_custom_call.1} parent=1 // loop_footer_branch
      %17 = sbr.rel target = $region3
    $region8: #{tpu_custom_call.1} parent=1 // loop_exit
      _
    %617 = vsyncpa [#allocation3], 1
    %s618 = scalar_lea.sflag [#allocation3], 1
    %619 = vsyncpa %s618, 1
    %620 = vsyncpa [#allocation6], 1
    %621 = vsyncpa [#allocation4], 1
    %s622 = scalar_lea.sflag [#allocation4], 1
    %623 = vsyncpa %s622, 1

</llo_original>
